<compile_context>
chip_gen: v7x
topology: tpu7x:2x2x1
jax: 0.10.0
libtpu: 0.0.40
codegen_flags: <defaults>
</compile_context>

<pallas_src>
import functools

import jax
import jax.numpy as jnp
from jax import lax
from jax.experimental import pallas as pl
from jax.experimental.pallas import tpu as pltpu

BN_EPS = 1e-5     # torch.nn.BatchNorm1d default eps
LN_EPS = 1e-5     # torch_geometric LayerNorm default eps
LATENT = 128      # edges MLP is fixed at out=128, so the shared LayerNorm is 128
ROW_TILE = 512    # node-path row tile (512-1024 reaches ~85% of HBM roofline)


# --------------------------------------------------------------------------- #
# Kernels
# --------------------------------------------------------------------------- #
def _node_pass1_kernel(n_rows, x_ref, w1_ref, b1_ref, w2_ref, b2_ref,
                       y_ref, stats_ref):
    """Node MLP (BN folded into layer 1) on one row tile + partial LN stats."""
    tm = x_ref.shape[0]
    f = y_ref.shape[1]

    h = jnp.dot(x_ref[...].astype(jnp.bfloat16), w1_ref[...],
                preferred_element_type=jnp.float32) + b1_ref[...]
    h = jnp.maximum(h, 0.0)
    y = jnp.dot(h.astype(jnp.bfloat16), w2_ref[...],
                preferred_element_type=jnp.float32) + b2_ref[...]
    y_ref[...] = y

    # Mask rows past the true N (ragged last tile) before the reductions.
    row = pl.program_id(0) * tm + lax.broadcasted_iota(jnp.int32, (tm, 1), 0)
    yv = jnp.where(row < n_rows, y, 0.0)
    s_part = jnp.sum(yv, axis=0, keepdims=True)            # [1, F]
    ss_part = jnp.sum(yv * yv, axis=0, keepdims=True)      # [1, F]

    # Pack the two partials into an (8, F)-aligned stats tile:
    #   sublane 0 = sum, sublane 1 = sum of squares, the rest zero.
    sub = lax.broadcasted_iota(jnp.int32, (8, f), 0)
    stats_ref[0] = (jnp.where(sub == 0, s_part, 0.0)
                    + jnp.where(sub == 1, ss_part, 0.0))


def _node_pass2_kernel(y_ref, a_ref, b_ref, o_ref):
    """Apply the folded graph-LayerNorm affine: out = y * a + b (in place)."""
    o_ref[...] = y_ref[...] * a_ref[...] + b_ref[...]


def _edge_kernel(xe_ref, w1_ref, b1_ref, w2_ref, b2_ref, g_ref, bt_ref, o_ref):
    """Edge MLP (single [1, 72] sample) + its own graph LayerNorm, all in VMEM."""
    h = jnp.dot(xe_ref[...].astype(jnp.bfloat16), w1_ref[...],
                preferred_element_type=jnp.float32) + b1_ref[...]
    h = jnp.maximum(h, 0.0)
    y = jnp.dot(h.astype(jnp.bfloat16), w2_ref[...],
                preferred_element_type=jnp.float32) + b2_ref[...]
    n = jnp.float32(y.size)
    mu = jnp.sum(y, keepdims=True) / n                     # [1, 1]
    yc = y - mu
    var = jnp.sum(yc * yc, keepdims=True) / n              # population variance
    inv = pl.reciprocal(jnp.sqrt(var) + LN_EPS, approx=True)
    o_ref[...] = yc * (g_ref[...] * inv) + bt_ref[...]


# --------------------------------------------------------------------------- #
# Parameter construction (synthetic init, eval-mode BN folded into Linear-1)
# --------------------------------------------------------------------------- #
def _init_mlp(key, in_c, hid_c, out_c):
    k1, k2, k3, k4 = jax.random.split(key, 4)
    s1 = 1.0 / jnp.sqrt(jnp.float32(in_c))
    s2 = 1.0 / jnp.sqrt(jnp.float32(hid_c))
    return {
        "w1": jax.random.uniform(k1, (in_c, hid_c), jnp.float32, -s1, s1),
        "b1": jax.random.uniform(k2, (1, hid_c), jnp.float32, -s1, s1),
        # BatchNorm1d defaults: running_mean=0, running_var=1, weight=1, bias=0
        "bn_rm": jnp.zeros((1, hid_c), jnp.float32),
        "bn_rv": jnp.ones((1, hid_c), jnp.float32),
        "bn_w": jnp.ones((1, hid_c), jnp.float32),
        "bn_b": jnp.zeros((1, hid_c), jnp.float32),
        "w2": jax.random.uniform(k3, (hid_c, out_c), jnp.float32, -s2, s2),
        "b2": jax.random.uniform(k4, (1, out_c), jnp.float32, -s2, s2),
    }


def _fold_bn(mlp):
    """Fold eval-mode BatchNorm into Linear-1; store MXU weights in bf16."""
    scale = mlp["bn_w"] * lax.rsqrt(mlp["bn_rv"] + BN_EPS)           # [1, H]
    w1 = (mlp["w1"] * scale).astype(jnp.bfloat16)                    # [K, H]
    b1 = (mlp["b1"] - mlp["bn_rm"]) * scale + mlp["bn_b"]            # [1, H] f32
    return {"w1": w1, "b1": b1,
            "w2": mlp["w2"].astype(jnp.bfloat16), "b2": mlp["b2"]}


# --------------------------------------------------------------------------- #
# Forward
# --------------------------------------------------------------------------- #
def _encoder_forward(params, x, edge_attr):
    nodes, edges = params["nodes"], params["edges"]
    gamma, beta = params["gamma"], params["beta"]

    x = x.astype(jnp.float32)
    n, f = x.shape[0], LATENT

    tm = n if n < ROW_TILE else ROW_TILE
    n_blocks = pl.cdiv(n, tm)
    const2 = lambda i: (0, 0)

    hid = nodes["w1"].shape[1]
    flops = 2 * n * nodes["w1"].shape[0] * hid + 2 * n * hid * f + 6 * n * f
    bytes_accessed = ((x.size + n * f + n_blocks * 8 * f) * 4
                      + (nodes["w1"].size + nodes["w2"].size) * 2
                      + (hid + 2 * f) * 4)

    # ---- node path, pass 1: MLP tiles + per-tile partial LayerNorm stats ----
    y_un, stats = pl.pallas_call(
        functools.partial(_node_pass1_kernel, n),
        grid=(n_blocks,),
        in_specs=[
            pl.BlockSpec((tm, x.shape[1]), lambda i: (i, 0)),
            pl.BlockSpec(nodes["w1"].shape, const2),
            pl.BlockSpec(nodes["b1"].shape, const2),
            pl.BlockSpec(nodes["w2"].shape, const2),
            pl.BlockSpec(nodes["b2"].shape, const2),
        ],
        out_specs=(
            pl.BlockSpec((tm, f), lambda i: (i, 0)),
            pl.BlockSpec((1, 8, f), lambda i: (i, 0, 0)),
        ),
        out_shape=(
            jax.ShapeDtypeStruct((n, f), jnp.float32),
            jax.ShapeDtypeStruct((n_blocks, 8, f), jnp.float32),
        ),
        compiler_params=pltpu.CompilerParams(
            dimension_semantics=("parallel",)),
        cost_estimate=pl.CostEstimate(
            flops=int(flops), transcendentals=0,
            bytes_accessed=int(bytes_accessed)),
    )(x, nodes["w1"], nodes["b1"], nodes["w2"], nodes["b2"])

    # ---- tiny scalar glue: fold graph-mode LayerNorm into one FMA ----------
    cnt = jnp.float32(n * f)
    s = jnp.sum(stats[:, 0, :])
    ss = jnp.sum(stats[:, 1, :])
    mu = s / cnt
    var = jnp.maximum(ss / cnt - mu * mu, 0.0)       # population variance
    # TODO(synk): for very large N switch to a centered (two-pass) variance to
    # avoid ss/n - mu^2 cancellation; it costs one extra read of y_un.
    a = gamma / (jnp.sqrt(var) + LN_EPS)             # [1, F]
    b = beta - mu * a                                # [1, F]

    # ---- node path, pass 2: apply the affine in place ----------------------
    node_out = pl.pallas_call(
        _node_pass2_kernel,
        grid=(n_blocks,),
        in_specs=[
            pl.BlockSpec((tm, f), lambda i: (i, 0)),
            pl.BlockSpec((1, f), const2),
            pl.BlockSpec((1, f), const2),
        ],
        out_specs=pl.BlockSpec((tm, f), lambda i: (i, 0)),
        out_shape=jax.ShapeDtypeStruct((n, f), jnp.float32),
        compiler_params=pltpu.CompilerParams(
            dimension_semantics=("parallel",)),
        input_output_aliases={0: 0},
    )(y_un, a, b)

    # ---- edge path: one tiny un-gridded call --------------------------------
    xe = edge_attr.astype(jnp.float32).reshape(1, -1)
    vmem = lambda: pl.BlockSpec(memory_space=pltpu.MemorySpace.VMEM)
    edge_out = pl.pallas_call(
        _edge_kernel,
        out_shape=jax.ShapeDtypeStruct((1, f), jnp.float32),
        in_specs=[vmem() for _ in range(7)],
        out_specs=vmem(),
    )(xe, edges["w1"], edges["b1"], edges["w2"], edges["b2"], gamma, beta)

    return node_out, edge_out


def _reference_forward(params, x, edge_attr):
    """Pure-JAX f32 reference (same folded params) for a loose numeric check."""
    def mlp(p, inp):
        h = jnp.maximum(inp @ p["w1"].astype(jnp.float32) + p["b1"], 0.0)
        return h @ p["w2"].astype(jnp.float32) + p["b2"]

    def graph_ln(y):
        mu = jnp.mean(y)
        std = jnp.sqrt(jnp.mean((y - mu) ** 2))
        return (y - mu) / (std + LN_EPS) * params["gamma"] + params["beta"]

    yn = graph_ln(mlp(params["nodes"], x.astype(jnp.float32)))
    ye = graph_ln(mlp(params["edges"],
                      edge_attr.astype(jnp.float32).reshape(1, -1)))
    return yn, ye


class EncoderPallas:
    """JAX/Pallas port of encoder(numberHiddenLayers=2, numOfHidden, latentSize)."""

    def __init__(self, key, num_hidden, latent_size):
        # The edges MLP is fixed at in=72, hidden=out=128 in the reference and
        # shares the LayerNorm(latentSize), so latentSize must be 128.
        assert latent_size == LATENT, "shared LayerNorm requires latentSize == 128"
        k_nodes, k_edges = jax.random.split(key)
        self.params = {
            "nodes": _fold_bn(_init_mlp(k_nodes, 33, num_hidden, latent_size)),
            "edges": _fold_bn(_init_mlp(k_edges, 72, 128, 128)),
            # PyG LayerNorm(in_channels=latent): weight=1, bias=0 at init
            "gamma": jnp.ones((1, latent_size), jnp.float32),
            "beta": jnp.zeros((1, latent_size), jnp.float32),
        }
        self._forward = jax.jit(_encoder_forward)

    def __call__(self, x, edge_index, edge_attr):
        node_out, edge_out = self._forward(self.params, x, edge_attr)
        # TODO(synk): torch_geometric `Data` container has no JAX equivalent;
        # returning a plain dict with the same fields.
        return {"x": node_out, "edge_index": edge_index, "edge_attr": edge_out}


if __name__ == "__main__":
    key = jax.random.PRNGKey(0)
    k_param, k_x, k_e, k_idx = jax.random.split(key, 4)

    # Small synthetic "ZINC-like" graph: 32 nodes x 33 features; the reference's
    # edges MLP consumes the unsqueezed length-72 edge_attr vector as ONE sample.
    num_nodes, num_edges = 32, 72
    x = jax.random.normal(k_x, (num_nodes, 33), jnp.float32)
    edge_attr = jax.random.normal(k_e, (num_edges,), jnp.float32)
    edge_index = jax.random.randint(k_idx, (2, num_edges), 0, num_nodes,
                                    dtype=jnp.int32)

    model = EncoderPallas(k_param, num_hidden=128, latent_size=128)
    out = model(x, edge_index, edge_attr)
    jax.block_until_ready(out["x"])
    jax.block_until_ready(out["edge_attr"])

    assert out["x"].shape == (num_nodes, LATENT)
    assert out["edge_attr"].shape == (1, LATENT)
    assert out["edge_index"].shape == (2, num_edges)
    assert bool(jnp.all(jnp.isfinite(out["x"])))
    assert bool(jnp.all(jnp.isfinite(out["edge_attr"])))

    # Loose numeric check vs a pure-JAX f32 reference (bf16 MXU operands).
    ref_n, ref_e = _reference_forward(model.params, x, edge_attr)
    assert float(jnp.max(jnp.abs(out["x"] - ref_n))) < 5e-2
    assert float(jnp.max(jnp.abs(out["edge_attr"] - ref_e))) < 5e-2

    print("KERNEL_OK")
</pallas_src>

<mosaic_0001>
module attributes {stable_mosaic.version = 11 : i64} {
  func.func @_node_pass2_kernel(%arg0: i32, %arg1: memref<32x128xf32, #tpu.memory_space<vmem>>, %arg2: memref<1x128xf32, #tpu.memory_space<vmem>>, %arg3: memref<1x128xf32, #tpu.memory_space<vmem>>, %arg4: memref<32x128xf32, #tpu.memory_space<vmem>>) attributes {dimension_semantics = [#tpu.dimension_semantics<parallel>], iteration_bounds = array<i64: 1>, scalar_prefetch = 0 : i64, scratch_operands = 0 : i64, tpu.core_type = #tpu.core_type<tc>, window_params = [{transform_indices = @transform_0, window_bounds = array<i64: 32, 128>}, {pipeline_mode = #tpu.pipeline_mode<synchronous>, transform_indices = @transform_1, window_bounds = array<i64: 1, 128>}, {pipeline_mode = #tpu.pipeline_mode<synchronous>, transform_indices = @transform_2, window_bounds = array<i64: 1, 128>}, {transform_indices = @transform_3, window_bounds = array<i64: 32, 128>}]} {
    %c0 = arith.constant 0 : index
    %c0_0 = arith.constant 0 : index
    %0 = vector.load %arg1[%c0, %c0_0] : memref<32x128xf32, #tpu.memory_space<vmem>>, vector<32x128xf32>
    %c0_1 = arith.constant 0 : index
    %c0_2 = arith.constant 0 : index
    %1 = vector.load %arg2[%c0_1, %c0_2] : memref<1x128xf32, #tpu.memory_space<vmem>>, vector<1x128xf32>
    %2 = vector.broadcast %1 : vector<1x128xf32> to vector<32x128xf32>
    %3 = arith.mulf %0, %2 : vector<32x128xf32>
    %c0_3 = arith.constant 0 : index
    %c0_4 = arith.constant 0 : index
    %4 = vector.load %arg3[%c0_3, %c0_4] : memref<1x128xf32, #tpu.memory_space<vmem>>, vector<1x128xf32>
    %5 = vector.broadcast %4 : vector<1x128xf32> to vector<32x128xf32>
    %6 = arith.addf %3, %5 : vector<32x128xf32>
    %c0_5 = arith.constant 0 : index
    %c0_6 = arith.constant 0 : index
    %7 = vector.load %arg4[%c0_5, %c0_6] : memref<32x128xf32, #tpu.memory_space<vmem>>, vector<32x128xf32>
    tpu.vector_store %arg4[%c0_5, %c0_6], %6 {strides = array<i32>} : memref<32x128xf32, #tpu.memory_space<vmem>>, vector<32x128xf32>,
    return
  }
  func.func @transform_0(%arg0: i32) -> (i32, i32) {
    %c0_i32 = arith.constant 0 : i32
    %c0_i32_0 = arith.constant 0 : i32
    return %arg0, %c0_i32 : i32, i32
  }
  func.func @transform_1(%arg0: i32) -> (i32, i32) {
    %c0_i32 = arith.constant 0 : i32
    %c0_i32_0 = arith.constant 0 : i32
    %c0_i32_1 = arith.constant 0 : i32
    return %c0_i32, %c0_i32_0 : i32, i32
  }
  func.func @transform_2(%arg0: i32) -> (i32, i32) {
    %c0_i32 = arith.constant 0 : i32
    %c0_i32_0 = arith.constant 0 : i32
    %c0_i32_1 = arith.constant 0 : i32
    return %c0_i32, %c0_i32_0 : i32, i32
  }
  func.func @transform_3(%arg0: i32) -> (i32, i32) {
    %c0_i32 = arith.constant 0 : i32
    %c0_i32_0 = arith.constant 0 : i32
    return %arg0, %c0_i32 : i32, i32
  }
}

module attributes {stable_mosaic.version = 11 : i64} {
  func.func @_node_pass1_kernel(%arg0: i32, %arg1: memref<32x33xf32, #tpu.memory_space<vmem>>, %arg2: memref<33x128xbf16, #tpu.memory_space<vmem>>, %arg3: memref<1x128xf32, #tpu.memory_space<vmem>>, %arg4: memref<128x128xbf16, #tpu.memory_space<vmem>>, %arg5: memref<1x128xf32, #tpu.memory_space<vmem>>, %arg6: memref<32x128xf32, #tpu.memory_space<vmem>>, %arg7: memref<1x8x128xf32, #tpu.memory_space<vmem>>) attributes {dimension_semantics = [#tpu.dimension_semantics<parallel>], iteration_bounds = array<i64: 1>, scalar_prefetch = 0 : i64, scratch_operands = 0 : i64, tpu.core_type = #tpu.core_type<tc>, window_params = [{transform_indices = @transform_0, window_bounds = array<i64: 32, 33>}, {pipeline_mode = #tpu.pipeline_mode<synchronous>, transform_indices = @transform_1, window_bounds = array<i64: 33, 128>}, {pipeline_mode = #tpu.pipeline_mode<synchronous>, transform_indices = @transform_2, window_bounds = array<i64: 1, 128>}, {pipeline_mode = #tpu.pipeline_mode<synchronous>, transform_indices = @transform_3, window_bounds = array<i64: 128, 128>}, {pipeline_mode = #tpu.pipeline_mode<synchronous>, transform_indices = @transform_4, window_bounds = array<i64: 1, 128>}, {transform_indices = @transform_5, window_bounds = array<i64: 32, 128>}, {transform_indices = @transform_6, window_bounds = array<i64: 1, 8, 128>}]} {
    %c0 = arith.constant 0 : index
    %c0_0 = arith.constant 0 : index
    %0 = vector.load %arg1[%c0, %c0_0] : memref<32x33xf32, #tpu.memory_space<vmem>>, vector<32x33xf32>
    %1 = arith.truncf %0 : vector<32x33xf32> to vector<32x33xbf16>
    %c0_1 = arith.constant 0 : index
    %c0_2 = arith.constant 0 : index
    %2 = vector.load %arg2[%c0_1, %c0_2] : memref<33x128xbf16, #tpu.memory_space<vmem>>, vector<33x128xbf16>
    %cst = arith.constant dense<0.000000e+00> : vector<32x128xf32>
    %3 = tpu.matmul %1, %2, %cst {dimension_numbers = #tpu.dot_dimension_numbers<[1], [0], [0], [1], [0, 0, 1, 1], [], []>} : vector<32x33xbf16>, vector<33x128xbf16>, vector<32x128xf32> -> vector<32x128xf32>
    %c0_3 = arith.constant 0 : index
    %c0_4 = arith.constant 0 : index
    %4 = vector.load %arg3[%c0_3, %c0_4] : memref<1x128xf32, #tpu.memory_space<vmem>>, vector<1x128xf32>
    %5 = vector.broadcast %4 : vector<1x128xf32> to vector<32x128xf32>
    %6 = arith.addf %3, %5 : vector<32x128xf32>
    %cst_5 = arith.constant 0.000000e+00 : f32
    %7 = vector.broadcast %cst_5 : f32 to vector<32x128xf32>
    %8 = arith.maximumf %6, %7 : vector<32x128xf32>
    %9 = arith.truncf %8 : vector<32x128xf32> to vector<32x128xbf16>
    %c0_6 = arith.constant 0 : index
    %c0_7 = arith.constant 0 : index
    %10 = vector.load %arg4[%c0_6, %c0_7] : memref<128x128xbf16, #tpu.memory_space<vmem>>, vector<128x128xbf16>
    %cst_8 = arith.constant dense<0.000000e+00> : vector<32x128xf32>
    %11 = tpu.matmul %9, %10, %cst_8 {dimension_numbers = #tpu.dot_dimension_numbers<[1], [0], [0], [1], [0, 0, 1, 1], [], []>} : vector<32x128xbf16>, vector<128x128xbf16>, vector<32x128xf32> -> vector<32x128xf32>
    %c0_9 = arith.constant 0 : index
    %c0_10 = arith.constant 0 : index
    %12 = vector.load %arg5[%c0_9, %c0_10] : memref<1x128xf32, #tpu.memory_space<vmem>>, vector<1x128xf32>
    %13 = vector.broadcast %12 : vector<1x128xf32> to vector<32x128xf32>
    %14 = arith.addf %11, %13 : vector<32x128xf32>
    %c0_11 = arith.constant 0 : index
    %c0_12 = arith.constant 0 : index
    %15 = vector.load %arg6[%c0_11, %c0_12] : memref<32x128xf32, #tpu.memory_space<vmem>>, vector<32x128xf32>
    tpu.vector_store %arg6[%c0_11, %c0_12], %14 {strides = array<i32>} : memref<32x128xf32, #tpu.memory_space<vmem>>, vector<32x128xf32>,
    %c32_i32 = arith.constant 32 : i32
    %16 = arith.muli %arg0, %c32_i32 : i32
    %17 = tpu.iota {dimensions = array<i32: 0>} : vector<32x1xi32>
    %18 = vector.broadcast %16 : i32 to vector<32x1xi32>
    %19 = arith.addi %18, %17 : vector<32x1xi32>
    %c32_i32_13 = arith.constant 32 : i32
    %20 = vector.broadcast %c32_i32_13 : i32 to vector<32x1xi32>
    %21 = arith.cmpi slt, %19, %20 : vector<32x1xi32>
    %cst_14 = arith.constant 0.000000e+00 : f32
    %22 = vector.shape_cast %21 : vector<32x1xi1> to vector<32x1xi1>
    %23 = vector.broadcast %22 : vector<32x1xi1> to vector<32x128xi1>
    %24 = vector.broadcast %cst_14 : f32 to vector<32x128xf32>
    %25 = arith.select %23, %14, %24 : vector<32x128xi1>, vector<32x128xf32>
    %cst_15 = arith.constant dense<0.000000e+00> : vector<128xf32>
    %26 = vector.multi_reduction <add>, %25, %cst_15 [0] : vector<32x128xf32> to vector<128xf32>
    %27 = vector.shape_cast %26 : vector<128xf32> to vector<1x128xf32>
    %28 = arith.mulf %25, %25 : vector<32x128xf32>
    %cst_16 = arith.constant dense<0.000000e+00> : vector<128xf32>
    %29 = vector.multi_reduction <add>, %28, %cst_16 [0] : vector<32x128xf32> to vector<128xf32>
    %30 = vector.shape_cast %29 : vector<128xf32> to vector<1x128xf32>
    %31 = tpu.iota {dimensions = array<i32: 0>} : vector<8x128xi32>
    %c0_i32 = arith.constant 0 : i32
    %32 = vector.broadcast %c0_i32 : i32 to vector<8x128xi32>
    %33 = arith.cmpi eq, %31, %32 : vector<8x128xi32>
    %cst_17 = arith.constant 0.000000e+00 : f32
    %34 = vector.shape_cast %27 : vector<1x128xf32> to vector<1x128xf32>
    %35 = vector.broadcast %34 : vector<1x128xf32> to vector<8x128xf32>
    %36 = vector.broadcast %cst_17 : f32 to vector<8x128xf32>
    %37 = arith.select %33, %35, %36 : vector<8x128xi1>, vector<8x128xf32>
    %c1_i32 = arith.constant 1 : i32
    %38 = vector.broadcast %c1_i32 : i32 to vector<8x128xi32>
    %39 = arith.cmpi eq, %31, %38 : vector<8x128xi32>
    %cst_18 = arith.constant 0.000000e+00 : f32
    %40 = vector.shape_cast %30 : vector<1x128xf32> to vector<1x128xf32>
    %41 = vector.broadcast %40 : vector<1x128xf32> to vector<8x128xf32>
    %42 = vector.broadcast %cst_18 : f32 to vector<8x128xf32>
    %43 = arith.select %39, %41, %42 : vector<8x128xi1>, vector<8x128xf32>
    %44 = arith.addf %37, %43 : vector<8x128xf32>
    %c0_19 = arith.constant 0 : index
    %c0_20 = arith.constant 0 : index
    %c0_21 = arith.constant 0 : index
    %45 = vector.load %arg7[%c0_19, %c0_20, %c0_21] : memref<1x8x128xf32, #tpu.memory_space<vmem>>, vector<1x8x128xf32>
    %46 = vector.shape_cast %45 : vector<1x8x128xf32> to vector<8x128xf32>
    %47 = vector.shape_cast %44 : vector<8x128xf32> to vector<1x8x128xf32>
    tpu.vector_store %arg7[%c0_19, %c0_20, %c0_21], %47 {strides = array<i32>} : memref<1x8x128xf32, #tpu.memory_space<vmem>>, vector<1x8x128xf32>,
    return
  }
  func.func @transform_0(%arg0: i32) -> (i32, i32) {
    %c0_i32 = arith.constant 0 : i32
    %c0_i32_0 = arith.constant 0 : i32
    return %arg0, %c0_i32 : i32, i32
  }
  func.func @transform_1(%arg0: i32) -> (i32, i32) {
    %c0_i32 = arith.constant 0 : i32
    %c0_i32_0 = arith.constant 0 : i32
    %c0_i32_1 = arith.constant 0 : i32
    return %c0_i32, %c0_i32_0 : i32, i32
  }
  func.func @transform_2(%arg0: i32) -> (i32, i32) {
    %c0_i32 = arith.constant 0 : i32
    %c0_i32_0 = arith.constant 0 : i32
    %c0_i32_1 = arith.constant 0 : i32
    return %c0_i32, %c0_i32_0 : i32, i32
  }
  func.func @transform_3(%arg0: i32) -> (i32, i32) {
    %c0_i32 = arith.constant 0 : i32
    %c0_i32_0 = arith.constant 0 : i32
    %c0_i32_1 = arith.constant 0 : i32
    return %c0_i32, %c0_i32_0 : i32, i32
  }
  func.func @transform_4(%arg0: i32) -> (i32, i32) {
    %c0_i32 = arith.constant 0 : i32
    %c0_i32_0 = arith.constant 0 : i32
    %c0_i32_1 = arith.constant 0 : i32
    return %c0_i32, %c0_i32_0 : i32, i32
  }
  func.func @transform_5(%arg0: i32) -> (i32, i32) {
    %c0_i32 = arith.constant 0 : i32
    %c0_i32_0 = arith.constant 0 : i32
    return %arg0, %c0_i32 : i32, i32
  }
  func.func @transform_6(%arg0: i32) -> (i32, i32, i32) {
    %c0_i32 = arith.constant 0 : i32
    %c0_i32_0 = arith.constant 0 : i32
    %c0_i32_1 = arith.constant 0 : i32
    return %arg0, %c0_i32, %c0_i32_0 : i32, i32, i32
  }
}

module attributes {stable_mosaic.version = 11 : i64} {
  func.func @_edge_kernel(%arg0: memref<1x72xf32, #tpu.memory_space<vmem>>, %arg1: memref<72x128xbf16, #tpu.memory_space<vmem>>, %arg2: memref<1x128xf32, #tpu.memory_space<vmem>>, %arg3: memref<128x128xbf16, #tpu.memory_space<vmem>>, %arg4: memref<1x128xf32, #tpu.memory_space<vmem>>, %arg5: memref<1x128xf32, #tpu.memory_space<vmem>>, %arg6: memref<1x128xf32, #tpu.memory_space<vmem>>, %arg7: memref<1x128xf32, #tpu.memory_space<vmem>>) attributes {dimension_semantics = [], scalar_prefetch = 0 : i64, scratch_operands = 0 : i64, tpu.core_type = #tpu.core_type<tc>} {
    %c0 = arith.constant 0 : index
    %c0_0 = arith.constant 0 : index
    %0 = vector.load %arg0[%c0, %c0_0] : memref<1x72xf32, #tpu.memory_space<vmem>>, vector<1x72xf32>
    %1 = arith.truncf %0 : vector<1x72xf32> to vector<1x72xbf16>
    %c0_1 = arith.constant 0 : index
    %c0_2 = arith.constant 0 : index
    %2 = vector.load %arg1[%c0_1, %c0_2] : memref<72x128xbf16, #tpu.memory_space<vmem>>, vector<72x128xbf16>
    %cst = arith.constant dense<0.000000e+00> : vector<1x128xf32>
    %3 = tpu.matmul %1, %2, %cst {dimension_numbers = #tpu.dot_dimension_numbers<[1], [0], [0], [1], [0, 0, 1, 1], [], []>} : vector<1x72xbf16>, vector<72x128xbf16>, vector<1x128xf32> -> vector<1x128xf32>
    %c0_3 = arith.constant 0 : index
    %c0_4 = arith.constant 0 : index
    %4 = vector.load %arg2[%c0_3, %c0_4] : memref<1x128xf32, #tpu.memory_space<vmem>>, vector<1x128xf32>
    %5 = arith.addf %3, %4 : vector<1x128xf32>
    %cst_5 = arith.constant 0.000000e+00 : f32
    %6 = vector.broadcast %cst_5 : f32 to vector<1x128xf32>
    %7 = arith.maximumf %5, %6 : vector<1x128xf32>
    %8 = arith.truncf %7 : vector<1x128xf32> to vector<1x128xbf16>
    %c0_6 = arith.constant 0 : index
    %c0_7 = arith.constant 0 : index
    %9 = vector.load %arg3[%c0_6, %c0_7] : memref<128x128xbf16, #tpu.memory_space<vmem>>, vector<128x128xbf16>
    %cst_8 = arith.constant dense<0.000000e+00> : vector<1x128xf32>
    %10 = tpu.matmul %8, %9, %cst_8 {dimension_numbers = #tpu.dot_dimension_numbers<[1], [0], [0], [1], [0, 0, 1, 1], [], []>} : vector<1x128xbf16>, vector<128x128xbf16>, vector<1x128xf32> -> vector<1x128xf32>
    %c0_9 = arith.constant 0 : index
    %c0_10 = arith.constant 0 : index
    %11 = vector.load %arg4[%c0_9, %c0_10] : memref<1x128xf32, #tpu.memory_space<vmem>>, vector<1x128xf32>
    %12 = arith.addf %10, %11 : vector<1x128xf32>
    %13 = vector.shape_cast %12 : vector<1x128xf32> to vector<1x1x128xf32>
    %cst_11 = arith.constant dense<0.000000e+00> : vector<1xf32>
    %14 = vector.multi_reduction <add>, %13, %cst_11 [1, 2] : vector<1x1x128xf32> to vector<1xf32>
    %15 = vector.shape_cast %14 : vector<1xf32> to vector<1x1x1xf32>
    %16 = vector.extract %15[0, 0, 0] : f32 from vector<1x1x1xf32>
    %17 = vector.broadcast %16 : f32 to vector<1x1xf32>
    %cst_12 = arith.constant 1.280000e+02 : f32
    %18 = vector.broadcast %cst_12 : f32 to vector<1x1xf32>
    %19 = arith.divf %17, %18 : vector<1x1xf32>
    %20 = vector.broadcast %19 : vector<1x1xf32> to vector<1x128xf32>
    %21 = arith.subf %12, %20 : vector<1x128xf32>
    %22 = arith.mulf %21, %21 : vector<1x128xf32>
    %23 = vector.shape_cast %22 : vector<1x128xf32> to vector<1x1x128xf32>
    %cst_13 = arith.constant dense<0.000000e+00> : vector<1xf32>
    %24 = vector.multi_reduction <add>, %23, %cst_13 [1, 2] : vector<1x1x128xf32> to vector<1xf32>
    %25 = vector.shape_cast %24 : vector<1xf32> to vector<1x1x1xf32>
    %26 = vector.extract %25[0, 0, 0] : f32 from vector<1x1x1xf32>
    %27 = vector.broadcast %26 : f32 to vector<1x1xf32>
    %cst_14 = arith.constant 1.280000e+02 : f32
    %28 = vector.broadcast %cst_14 : f32 to vector<1x1xf32>
    %29 = arith.divf %27, %28 : vector<1x1xf32>
    %30 = math.sqrt %29 : vector<1x1xf32>
    %cst_15 = arith.constant 9.99999974E-6 : f32
    %31 = vector.broadcast %cst_15 : f32 to vector<1x1xf32>
    %32 = arith.addf %30, %31 : vector<1x1xf32>
    %33 = tpu.reciprocal %32 {approx = true} : vector<1x1xf32> -> vector<1x1xf32>
    %c0_16 = arith.constant 0 : index
    %c0_17 = arith.constant 0 : index
    %34 = vector.load %arg5[%c0_16, %c0_17] : memref<1x128xf32, #tpu.memory_space<vmem>>, vector<1x128xf32>
    %35 = vector.broadcast %33 : vector<1x1xf32> to vector<1x128xf32>
    %36 = arith.mulf %34, %35 : vector<1x128xf32>
    %37 = arith.mulf %21, %36 : vector<1x128xf32>
    %c0_18 = arith.constant 0 : index
    %c0_19 = arith.constant 0 : index
    %38 = vector.load %arg6[%c0_18, %c0_19] : memref<1x128xf32, #tpu.memory_space<vmem>>, vector<1x128xf32>
    %39 = arith.addf %37, %38 : vector<1x128xf32>
    %c0_20 = arith.constant 0 : index
    %c0_21 = arith.constant 0 : index
    %40 = vector.load %arg7[%c0_20, %c0_21] : memref<1x128xf32, #tpu.memory_space<vmem>>, vector<1x128xf32>
    tpu.vector_store %arg7[%c0_20, %c0_21], %39 {strides = array<i32>} : memref<1x128xf32, #tpu.memory_space<vmem>>, vector<1x128xf32>,
    return
  }
}

</mosaic_0001>

<llo_original>
// kernel: _encoder_forward.4
$region0: #{_encoder_forward.4}
  #allocation0 [shape = 'u32[]', space=smem, size = 0x4, offset = 0x4, fixed_abs, tag = 'smem constant byte address 0x4 - core index']
  #allocation1 [shape = 'u32[144,128]{1,0:T(1,128)}', space=vmem, size = 0x12000, scoped, tag = 'internal scratch']
  %s0 = inlined_call_operand.vmem [shape: f32[32,128], index: 0, kind: input, shape index: {}, may-alias: {0,3}]
  %s1 = inlined_call_operand.vmem [shape: f32[1,128], index: 1, kind: input, shape index: {}]
  %s2 = inlined_call_operand.vmem [shape: f32[1,128], index: 2, kind: input, shape index: {}]
  %s3 = inlined_call_operand.vmem [shape: f32[32,128], index: 3, kind: output, shape index: {}, may-alias: {0,3}]
  %s4 = sld [smem:[#allocation0]]
  $region22: #{_encoder_forward.4} parent=0
    _
  %s6 = ssub.s32 1, %s4
  %s7 = scalar_select 0, %s6, %s4
  // Predicated region
  $region2: #{_encoder_forward.4} parent=0 // pred_check
    _
  $region3: #{_encoder_forward.4} parent=0 // pred_check_branch
    %9 = sbr.rel (0) target = $region5
  $region4: #{_encoder_forward.4} parent=0 // pred_region
    _
  $region5: #{_encoder_forward.4} parent=0 // pred_fallthru
    _
  // Predicated region
  $region6: #{_encoder_forward.4} parent=0 // pred_check
    _
  $region7: #{_encoder_forward.4} parent=0 // pred_check_branch
    %11 = sbr.rel (0) target = $region9
  $region8: #{_encoder_forward.4} parent=0 // pred_region
    _
  $region9: #{_encoder_forward.4} parent=0 // pred_fallthru
    _
  // Predicated region
  $region10: #{_encoder_forward.4} parent=0 // pred_check
    _
  $region11: #{_encoder_forward.4} parent=0 // pred_check_branch
    %13 = sbr.rel (0) target = $region13
  $region12: #{_encoder_forward.4} parent=0 // pred_region
    _
  $region13: #{_encoder_forward.4} parent=0 // pred_fallthru
    _
  %v14 = vld [vmem:[%s0] sm:$0xff]
  %v15 = vld [vmem:[%s0 + $0x8] sm:$0xff]
  %v16 = vld [vmem:[%s0 + $0x10] sm:$0xff]
  %v17 = vld [vmem:[%s0 + $0x18] sm:$0xff]
  %v18 = vld [vmem:[%s1] sm:$0x1]
  %v20 = vlaneseq
  %v21 = vshrl.u32 %v20, 7
  %v22 = vsub.s32 0, %v21
  %v23 = vrot.slane %v18, %v22
  %v25 = vmul.f32 %v14, %v23
  %v26 = vmul.f32 %v15, %v23
  %v27 = vmul.f32 %v16, %v23
  %v28 = vmul.f32 %v17, %v23
  %v29 = vld [vmem:[%s2] sm:$0x1]
  %v31 = vlaneseq
  %v32 = vshrl.u32 %v31, 7
  %v33 = vsub.s32 0, %v32
  %v34 = vrot.slane %v29, %v33
  %v36 = vadd.f32 %v25, %v34
  %v37 = vadd.f32 %v26, %v34
  %v38 = vadd.f32 %v27, %v34
  %v39 = vadd.f32 %v28, %v34
  %40 = vst [vmem:[%s3] sm:$0xff] %v36
  %41 = vst [vmem:[%s3 + $0x8] sm:$0xff] %v37
  %42 = vst [vmem:[%s3 + $0x10] sm:$0xff] %v38
  %43 = vst [vmem:[%s3 + $0x18] sm:$0xff] %v39
  // Predicated region
  $region14: #{_encoder_forward.4} parent=0 // pred_check
    _
  $region15: #{_encoder_forward.4} parent=0 // pred_check_branch
    %45 = sbr.rel (0) target = $region17
  $region16: #{_encoder_forward.4} parent=0 // pred_region
    _
  $region17: #{_encoder_forward.4} parent=0 // pred_fallthru
    _
  // Predicated region
  $region18: #{_encoder_forward.4} parent=0 // pred_check
    _
  $region19: #{_encoder_forward.4} parent=0 // pred_check_branch
    %47 = sbr.rel (0) target = $region21
  $region20: #{_encoder_forward.4} parent=0 // pred_region
    _
  $region21: #{_encoder_forward.4} parent=0 // pred_fallthru
    _

// kernel: _encoder_forward.3
$region0: #{_encoder_forward.3}
  #allocation0 [shape = 'u32[]', space=smem, size = 0x4, offset = 0x4, fixed_abs, tag = 'smem constant byte address 0x4 - core index']
  #allocation1 [shape = 'u32[144,128]{1,0:T(1,128)}', space=vmem, size = 0x12000, scoped, tag = 'internal scratch']
  %s0 = inlined_call_operand.hbm [shape: f32[32,33], index: 0, kind: input, shape index: {}]
  %s1 = inlined_call_operand.vmem [shape: bf16[33,128], index: 1, kind: input, shape index: {}]
  %s2 = inlined_call_operand.vmem [shape: f32[1,128], index: 2, kind: input, shape index: {}]
  %s3 = inlined_call_operand.hbm [shape: bf16[128,128], index: 3, kind: input, shape index: {}]
  %s4 = inlined_call_operand.vmem [shape: f32[1,128], index: 4, kind: input, shape index: {}]
  %s5 = inlined_call_operand.vmem [shape: f32[32,128], index: 5, kind: output, shape index: {0}]
  %s6 = inlined_call_operand.vmem [shape: f32[1,8,128], index: 6, kind: output, shape index: {1}]
  %7 = xla_tuple %s5, %s6
  %s8 = sld [smem:[#allocation0]]
  $region46: #{_encoder_forward.3} parent=0
    _
  %s10 = ssub.s32 1, %s8
  %s11 = scalar_select 0, %s10, %s8
  $region1: #{_encoder_forward.3} parent=0
    #allocation2 [shape = 'u8[16384]{0}', space=vmem, size = 0x4000, scoped, tag = 'input window, operand 0, single buffered']
    #allocation3 [shape = 's32[1]{0}', space=sflag, size = 0x4, scoped, tag = 'scoped memory for _encoder_forward.3']
    #allocation4 [shape = 'u8[32768]{0}', space=vmem, size = 0x8000, scoped, tag = 'input window, operand 3, single buffered']
    #allocation5 [shape = 's32[1]{0}', space=sflag, size = 0x4, scoped, tag = 'scoped memory for _encoder_forward.3']
    %12 = vsyncpa [#allocation3], 0
    %13 = vsyncpa [#allocation5], 0
    // Predicated region
    $region2: #{_encoder_forward.3} parent=1 // pred_check
      _
    $region3: #{_encoder_forward.3} parent=1 // pred_check_branch
      %15 = sbr.rel (0) target = $region5
    $region4: #{_encoder_forward.3} parent=1 // pred_region
      %s17 = ssub.s32 512, 512
      %18 = vsyncadd [#allocation3], %s17
      %s19 = sshll.u32 [#allocation2], 4
      %s20 = int_to_ptr.vmem [resolvable:$true] %s19
      %25 = dma.hbm_to_vmem [thread:$0]  %s0, 512, %s20, [#allocation3], 128, 128, 8
    $region5: #{_encoder_forward.3} parent=1 // pred_fallthru
      _
    // Predicated region
    $region6: #{_encoder_forward.3} parent=1 // pred_check
      _
    $region7: #{_encoder_forward.3} parent=1 // pred_check_branch
      %27 = sbr.rel (0) target = $region9
    $region8: #{_encoder_forward.3} parent=1 // pred_region
      _
    $region9: #{_encoder_forward.3} parent=1 // pred_fallthru
      _
    // Predicated region
    $region10: #{_encoder_forward.3} parent=1 // pred_check
      _
    $region11: #{_encoder_forward.3} parent=1 // pred_check_branch
      %29 = sbr.rel (0) target = $region13
    $region12: #{_encoder_forward.3} parent=1 // pred_region
      _
    $region13: #{_encoder_forward.3} parent=1 // pred_fallthru
      _
    // Predicated region
    $region14: #{_encoder_forward.3} parent=1 // pred_check
      _
    $region15: #{_encoder_forward.3} parent=1 // pred_check_branch
      %31 = sbr.rel (0) target = $region17
    $region16: #{_encoder_forward.3} parent=1 // pred_region
      %s33 = ssub.s32 1024, 1024
      %34 = vsyncadd [#allocation5], %s33
      %s35 = sshll.u32 [#allocation4], 4
      %s36 = int_to_ptr.vmem [resolvable:$true] %s35
      %41 = dma.hbm_to_vmem [thread:$0]  %s3, 1024, %s36, [#allocation5], 64, 64, 4
    $region17: #{_encoder_forward.3} parent=1 // pred_fallthru
      _
    // Predicated region
    $region18: #{_encoder_forward.3} parent=1 // pred_check
      _
    $region19: #{_encoder_forward.3} parent=1 // pred_check_branch
      %43 = sbr.rel (0) target = $region21
    $region20: #{_encoder_forward.3} parent=1 // pred_region
      _
    $region21: #{_encoder_forward.3} parent=1 // pred_fallthru
      _
    // Predicated region
    $region22: #{_encoder_forward.3} parent=1 // pred_check
      _
    $region23: #{_encoder_forward.3} parent=1 // pred_check_branch
      %45 = sbr.rel (0) target = $region25
    $region24: #{_encoder_forward.3} parent=1 // pred_region
      %46 = dma.done [#allocation3], 512
    $region25: #{_encoder_forward.3} parent=1 // pred_fallthru
      _
    // Predicated region
    $region26: #{_encoder_forward.3} parent=1 // pred_check
      _
    $region27: #{_encoder_forward.3} parent=1 // pred_check_branch
      %48 = sbr.rel (0) target = $region29
    $region28: #{_encoder_forward.3} parent=1 // pred_region
      %49 = dma.done [#allocation5], 1024
    $region29: #{_encoder_forward.3} parent=1 // pred_fallthru
      _
    %v51 = vld [vmem:[#allocation2] sm:$0xff]
    %v52 = vld [vmem:[#allocation2 + $0x8] sm:$0xff]
    %v53 = vld [vmem:[#allocation2 + $0x10] sm:$0xff]
    %v54 = vld [vmem:[#allocation2 + $0x18] sm:$0xff]
    %v55 = vpack.c.bf16 %v52, %v51
    %v56 = vpack.c.bf16 %v54, %v53
    %v57 = vld [vmem:[%s1] sm:$0xf]
    %v58 = vld [vmem:[%s1 + $0x4] sm:$0xf]
    %v59 = vld [vmem:[%s1 + $0x8] sm:$0xf]
    %v60 = vld [vmem:[%s1 + $0xc] sm:$0xf]
    %v61 = vld [vmem:[%s1 + $0x10] sm:$0x1]
    %v62 = vld [vmem:[%s2] sm:$0x1]
    %v64 = vlaneseq
    %v65 = vshrl.u32 %v64, 7
    %v66 = vsub.s32 0, %v65
    %v67 = vrot.slane %v62, %v66
    %v74 = vunpack.c.l.b16 %v57
    %v75 = vunpack.c.l.b16 %v58
    %v76 = vunpack.c.l.b16 %v59
    %v77 = vunpack.c.l.b16 %v60
    %v78 = vunpack.c.l.b16 %v61
    %v79 = vpack.c.b16 %v75, %v74
    %v80 = vpack.c.b16 %v77, %v76
    %v81 = vpack.c.b16 %v78, %v78
    %vm84 = vcmask 269312
    %v86 = vsel %vm84, %v55, 0
    %v89 = vsel %vm84, %v56, 0
    %vm91 = vcmask 1040384
    %v92 = vsel 0, 4294967295, 65535
    %v93 = vsel %vm91, %v92, 0
    %v95 = vand.u32 %v81, %v93
    %97 = vmatprep.subr.bf16.mxu0 0
    %98 = vmatpush1.bf16.msra.mxu0 %v79
    %99 = vmatprep.subr.bf16.mxu0 0
    %100 = vmatpush1.bf16.msra.mxu0 %v80
    %101 = vmatprep.subr.bf16.mxu0 0
    %102 = vmatpush1.bf16.msra.mxu0 %v95
    %103 = vmatprep.subr.bf16.mxu0 0
    %104 = vmatpush1.bf16.msra.mxu0 0
    %105 = vmatprep.subr.bf16.mxu0 0
    %106 = vmatpush1.bf16.msra.mxu0 0
    %107 = vmatprep.subr.bf16.mxu0 0
    %108 = vmatpush1.bf16.msra.mxu0 0
    %109 = vmatprep.subr.bf16.mxu0 0
    %110 = vmatpush1.bf16.msra.mxu0 0
    %111 = vmatprep.subr.bf16.mxu0 0
    %112 = vmatpush1.bf16.msra.mxu0 0
    %113 = vmatprep.subr.bf16.mxu0 0
    %114 = vmatpush1.bf16.msra.mxu0 0
    %115 = vmatprep.subr.bf16.mxu0 0
    %116 = vmatpush1.bf16.msra.mxu0 0
    %117 = vmatprep.subr.bf16.mxu0 0
    %118 = vmatpush1.bf16.msra.mxu0 0
    %119 = vmatprep.subr.bf16.mxu0 0
    %120 = vmatpush1.bf16.msra.mxu0 0
    %121 = vmatprep.subr.bf16.mxu0 0
    %122 = vmatpush1.bf16.msra.mxu0 0
    %123 = vmatprep.subr.bf16.mxu0 0
    %124 = vmatpush1.bf16.msra.mxu0 0
    %125 = vmatprep.subr.bf16.mxu0 0
    %126 = vmatpush1.bf16.msra.mxu0 0
    %127 = vmatprep.subr.bf16.mxu0 0
    %128 = vmatpush1.bf16.msra.mxu0 0
    %129 = vmatprep.mubr.bf16.mxu0 0
    %130 = vmatmul.mubr.bf16.gmra.mrb[0].mxu0 %v86
    %v131 = vpop.f32.mrb[0].mxu0
    %v132 = vadd.f32 %v67, %v131
    %v133 = vpop.f32.mrb[0].mxu0
    %v134 = vpop.f32.mrb[0].mxu0
    %v135 = vadd.f32 %v67, %v134
    %v136 = vpop.f32.mrb[0].mxu0
    %137 = vmatprep.mubr.bf16.mxu0 0
    %138 = vmatmul.mubr.bf16.gmra.mrb[0].mxu0 %v89
    %v139 = vpop.f32.mrb[0].mxu0
    %v140 = vadd.f32 %v67, %v139
    %v141 = vpop.f32.mrb[0].mxu0
    %v142 = vpop.f32.mrb[0].mxu0
    %v143 = vadd.f32 %v67, %v142
    %v144 = vpop.f32.mrb[0].mxu0
    %145 = vdwg.mxu0
    %v146 = vmax.f32 %v132, 0.0
    %v147 = vmax.f32 %v135, 0.0
    %v148 = vmax.f32 %v140, 0.0
    %v149 = vmax.f32 %v143, 0.0
    %v150 = vpack.c.bf16 %v147, %v146
    %v151 = vpack.c.bf16 %v149, %v148
    %v152 = vld [vmem:[#allocation4] sm:$0xf]
    %v153 = vld [vmem:[#allocation4 + $0x4] sm:$0xf]
    %v154 = vld [vmem:[#allocation4 + $0x8] sm:$0xf]
    %v155 = vld [vmem:[#allocation4 + $0xc] sm:$0xf]
    %v156 = vld [vmem:[#allocation4 + $0x10] sm:$0xf]
    %v157 = vld [vmem:[#allocation4 + $0x14] sm:$0xf]
    %v158 = vld [vmem:[#allocation4 + $0x18] sm:$0xf]
    %v159 = vld [vmem:[#allocation4 + $0x1c] sm:$0xf]
    %v160 = vld [vmem:[#allocation4 + $0x20] sm:$0xf]
    %v161 = vld [vmem:[#allocation4 + $0x24] sm:$0xf]
    %v162 = vld [vmem:[#allocation4 + $0x28] sm:$0xf]
    %v163 = vld [vmem:[#allocation4 + $0x2c] sm:$0xf]
    %v164 = vld [vmem:[#allocation4 + $0x30] sm:$0xf]
    %v165 = vld [vmem:[#allocation4 + $0x34] sm:$0xf]
    %v166 = vld [vmem:[#allocation4 + $0x38] sm:$0xf]
    %v167 = vld [vmem:[#allocation4 + $0x3c] sm:$0xf]
    %v168 = vld [vmem:[%s4] sm:$0x1]
    %v170 = vlaneseq
    %v171 = vshrl.u32 %v170, 7
    %v172 = vsub.s32 0, %v171
    %v173 = vrot.slane %v168, %v172
    %v191 = vunpack.c.l.b16 %v152
    %v192 = vunpack.c.l.b16 %v153
    %v193 = vunpack.c.l.b16 %v154
    %v194 = vunpack.c.l.b16 %v155
    %v195 = vunpack.c.l.b16 %v156
    %v196 = vunpack.c.l.b16 %v157
    %v197 = vunpack.c.l.b16 %v158
    %v198 = vunpack.c.l.b16 %v159
    %v199 = vunpack.c.l.b16 %v160
    %v200 = vunpack.c.l.b16 %v161
    %v201 = vunpack.c.l.b16 %v162
    %v202 = vunpack.c.l.b16 %v163
    %v203 = vunpack.c.l.b16 %v164
    %v204 = vunpack.c.l.b16 %v165
    %v205 = vunpack.c.l.b16 %v166
    %v206 = vunpack.c.l.b16 %v167
    %v207 = vpack.c.b16 %v192, %v191
    %v208 = vpack.c.b16 %v194, %v193
    %v209 = vpack.c.b16 %v196, %v195
    %v210 = vpack.c.b16 %v198, %v197
    %v211 = vpack.c.b16 %v200, %v199
    %v212 = vpack.c.b16 %v202, %v201
    %v213 = vpack.c.b16 %v204, %v203
    %v214 = vpack.c.b16 %v206, %v205
    %223 = vmatprep.subr.bf16.mxu0 0
    %224 = vmatpush1.bf16.msra.mxu0 %v207
    %225 = vmatprep.subr.bf16.mxu0 0
    %226 = vmatpush1.bf16.msra.mxu0 %v208
    %227 = vmatprep.subr.bf16.mxu0 0
    %228 = vmatpush1.bf16.msra.mxu0 %v209
    %229 = vmatprep.subr.bf16.mxu0 0
    %230 = vmatpush1.bf16.msra.mxu0 %v210
    %231 = vmatprep.subr.bf16.mxu0 0
    %232 = vmatpush1.bf16.msra.mxu0 %v211
    %233 = vmatprep.subr.bf16.mxu0 0
    %234 = vmatpush1.bf16.msra.mxu0 %v212
    %235 = vmatprep.subr.bf16.mxu0 0
    %236 = vmatpush1.bf16.msra.mxu0 %v213
    %237 = vmatprep.subr.bf16.mxu0 0
    %238 = vmatpush1.bf16.msra.mxu0 %v214
    %239 = vmatprep.subr.bf16.mxu0 0
    %240 = vmatpush1.bf16.msra.mxu0 0
    %241 = vmatprep.subr.bf16.mxu0 0
    %242 = vmatpush1.bf16.msra.mxu0 0
    %243 = vmatprep.subr.bf16.mxu0 0
    %244 = vmatpush1.bf16.msra.mxu0 0
    %245 = vmatprep.subr.bf16.mxu0 0
    %246 = vmatpush1.bf16.msra.mxu0 0
    %247 = vmatprep.subr.bf16.mxu0 0
    %248 = vmatpush1.bf16.msra.mxu0 0
    %249 = vmatprep.subr.bf16.mxu0 0
    %250 = vmatpush1.bf16.msra.mxu0 0
    %251 = vmatprep.subr.bf16.mxu0 0
    %252 = vmatpush1.bf16.msra.mxu0 0
    %253 = vmatprep.subr.bf16.mxu0 0
    %254 = vmatpush1.bf16.msra.mxu0 0
    %255 = vmatprep.mubr.bf16.mxu0 0
    %256 = vmatmul.mubr.bf16.gmra.mrb[0].mxu0 %v150
    %v257 = vpop.f32.mrb[0].mxu0
    %v258 = vadd.f32 %v173, %v257
    %v259 = vpop.f32.mrb[0].mxu0
    %v260 = vpop.f32.mrb[0].mxu0
    %v261 = vadd.f32 %v173, %v260
    %v262 = vpop.f32.mrb[0].mxu0
    %263 = vmatprep.mubr.bf16.mxu0 0
    %264 = vmatmul.mubr.bf16.gmra.mrb[0].mxu0 %v151
    %v265 = vpop.f32.mrb[0].mxu0
    %v266 = vadd.f32 %v173, %v265
    %v267 = vpop.f32.mrb[0].mxu0
    %v268 = vpop.f32.mrb[0].mxu0
    %v269 = vadd.f32 %v173, %v268
    %v270 = vpop.f32.mrb[0].mxu0
    %271 = vdwg.mxu0
    %272 = vst [vmem:[%s5] sm:$0xff] %v258
    %273 = vst [vmem:[%s5 + $0x8] sm:$0xff] %v261
    %274 = vst [vmem:[%s5 + $0x10] sm:$0xff] %v266
    %275 = vst [vmem:[%s5 + $0x18] sm:$0xff] %v269
    %s276 = smul.u32 0, 32
    %v277 = vlaneseq
    %v278 = vshrl.u32 %v277, 7
    %v279 = vadd.s32 %v278, 8
    %v280 = vadd.s32 %v278, 16
    %v281 = vadd.s32 %v278, 24
    %v282 = vstv %s276
    %v283 = vadd.s32 %v282, %v278
    %v284 = vadd.s32 %v282, %v279
    %v285 = vadd.s32 %v282, %v280
    %v286 = vadd.s32 %v282, %v281
    %vm287 = vcmp.lt.s32.totalorder %v283, 32
    %vm288 = vcmp.lt.s32.totalorder %v284, 32
    %vm289 = vcmp.lt.s32.totalorder %v285, 32
    %vm290 = vcmp.lt.s32.totalorder %v286, 32
    %v291 = vsel %vm287, 1, 0
    %v292 = vsel %vm288, 1, 0
    %v293 = vsel %vm289, 1, 0
    %v294 = vsel %vm290, 1, 0
    %vm295 = vcmp.eq.s32.totalorder %v291, 1
    %vm296 = vcmp.eq.s32.totalorder %v292, 1
    %vm297 = vcmp.eq.s32.totalorder %v293, 1
    %vm298 = vcmp.eq.s32.totalorder %v294, 1
    %v299 = vsel %vm295, %v258, 0.0
    %v300 = vsel %vm296, %v261, 0.0
    %v301 = vsel %vm297, %v266, 0.0
    %v302 = vsel %vm298, %v269, 0.0
    %v303 = vadd.f32 %v299, %v300
    %v304 = vadd.f32 %v303, %v301
    %v305 = vadd.f32 %v304, %v302
    %v306 = vrot.slane %v305, 4
    %v307 = vadd.f32 %v305, %v306
    %v308 = vrot.slane %v307, 2
    %v309 = vadd.f32 %v307, %v308
    %v310 = vrot.slane %v309, 1
    %v311 = vadd.f32 %v309, %v310
    %v312 = vmul.f32 %v299, %v299
    %v313 = vmul.f32 %v300, %v300
    %v314 = vmul.f32 %v301, %v301
    %v315 = vmul.f32 %v302, %v302
    %v316 = vadd.f32 %v312, %v313
    %v317 = vadd.f32 %v316, %v314
    %v318 = vadd.f32 %v317, %v315
    %v319 = vrot.slane %v318, 4
    %v320 = vadd.f32 %v318, %v319
    %v321 = vrot.slane %v320, 2
    %v322 = vadd.f32 %v320, %v321
    %v323 = vrot.slane %v322, 1
    %v324 = vadd.f32 %v322, %v323
    %vm325 = vcmp.eq.s32.totalorder %v278, 0
    %v326 = vsel %vm325, %v311, 0.0
    %vm327 = vcmp.eq.s32.totalorder %v278, 1
    %v328 = vsel %vm327, %v324, 0.0
    %v329 = vadd.f32 %v326, %v328
    %330 = vst [vmem:[%s6] sm:$0xff] %v329
    // Predicated region
    $region30: #{_encoder_forward.3} parent=1 // pred_check
      _
    $region31: #{_encoder_forward.3} parent=1 // pred_check_branch
      %332 = sbr.rel (0) target = $region33
    $region32: #{_encoder_forward.3} parent=1 // pred_region
      _
    $region33: #{_encoder_forward.3} parent=1 // pred_fallthru
      _
    // Predicated region
    $region34: #{_encoder_forward.3} parent=1 // pred_check
      _
    $region35: #{_encoder_forward.3} parent=1 // pred_check_branch
      %334 = sbr.rel (0) target = $region37
    $region36: #{_encoder_forward.3} parent=1 // pred_region
      _
    $region37: #{_encoder_forward.3} parent=1 // pred_fallthru
      _
    // Predicated region
    $region38: #{_encoder_forward.3} parent=1 // pred_check
      _
    $region39: #{_encoder_forward.3} parent=1 // pred_check_branch
      %336 = sbr.rel (0) target = $region41
    $region40: #{_encoder_forward.3} parent=1 // pred_region
      _
    $region41: #{_encoder_forward.3} parent=1 // pred_fallthru
      _
    // Predicated region
    $region42: #{_encoder_forward.3} parent=1 // pred_check
      _
    $region43: #{_encoder_forward.3} parent=1 // pred_check_branch
      %338 = sbr.rel (0) target = $region45
    $region44: #{_encoder_forward.3} parent=1 // pred_region
      _
    $region45: #{_encoder_forward.3} parent=1 // pred_fallthru
      _
    %339 = vsyncpa [#allocation3], 1
    %340 = vsyncpa [#allocation5], 1

// kernel: _encoder_forward.5
$region0: #{_encoder_forward.5}
  #allocation0 [shape = 'u32[]', space=smem, size = 0x4, offset = 0x4, fixed_abs, tag = 'smem constant byte address 0x4 - core index']
  #allocation1 [shape = 'u32[144,128]{1,0:T(1,128)}', space=vmem, size = 0x12000, scoped, tag = 'internal scratch']
  %s0 = inlined_call_operand.vmem [shape: f32[1,72], index: 0, kind: input, shape index: {}]
  %s1 = inlined_call_operand.vmem [shape: bf16[72,128], index: 1, kind: input, shape index: {}]
  %s2 = inlined_call_operand.vmem [shape: f32[1,128], index: 2, kind: input, shape index: {}]
  %s3 = inlined_call_operand.vmem [shape: bf16[128,128], index: 3, kind: input, shape index: {}]
  %s4 = inlined_call_operand.vmem [shape: f32[1,128], index: 4, kind: input, shape index: {}]
  %s5 = inlined_call_operand.vmem [shape: f32[1,128], index: 5, kind: input, shape index: {}]
  %s6 = inlined_call_operand.vmem [shape: f32[1,128], index: 6, kind: input, shape index: {}]
  %s7 = inlined_call_operand.hbm [shape: f32[1,128], index: 7, kind: output, shape index: {}]
  %s8 = sld [smem:[#allocation0]]
  $region38: #{_encoder_forward.5} parent=0
    _
  %s10 = ssub.s32 1, %s8
  %s11 = scalar_select 0, %s10, %s8
  $region1: #{_encoder_forward.5} parent=0
    #allocation2 [shape = 'u8[512]{0}', space=vmem, size = 0x400, scoped, tag = 'output window, operand 0, single buffered']
    #allocation3 [shape = 's32[1]{0}', space=sflag, size = 0x4, scoped, tag = 'scoped memory for _encoder_forward.5']
    %12 = vsyncpa [#allocation3], 0
    // Predicated region
    $region2: #{_encoder_forward.5} parent=1 // pred_check
      _
    $region3: #{_encoder_forward.5} parent=1 // pred_check_branch
      %14 = sbr.rel (0) target = $region5
    $region4: #{_encoder_forward.5} parent=1 // pred_region
      _
    $region5: #{_encoder_forward.5} parent=1 // pred_fallthru
      _
    // Predicated region
    $region6: #{_encoder_forward.5} parent=1 // pred_check
      _
    $region7: #{_encoder_forward.5} parent=1 // pred_check_branch
      %16 = sbr.rel (0) target = $region9
    $region8: #{_encoder_forward.5} parent=1 // pred_region
      _
    $region9: #{_encoder_forward.5} parent=1 // pred_fallthru
      _
    // Predicated region
    $region10: #{_encoder_forward.5} parent=1 // pred_check
      _
    $region11: #{_encoder_forward.5} parent=1 // pred_check_branch
      %18 = sbr.rel (0) target = $region13
    $region12: #{_encoder_forward.5} parent=1 // pred_region
      _
    $region13: #{_encoder_forward.5} parent=1 // pred_fallthru
      _
    // Predicated region
    $region14: #{_encoder_forward.5} parent=1 // pred_check
      _
    $region15: #{_encoder_forward.5} parent=1 // pred_check_branch
      %20 = sbr.rel (0) target = $region17
    $region16: #{_encoder_forward.5} parent=1 // pred_region
      _
    $region17: #{_encoder_forward.5} parent=1 // pred_fallthru
      _
    // Predicated region
    $region18: #{_encoder_forward.5} parent=1 // pred_check
      _
    $region19: #{_encoder_forward.5} parent=1 // pred_check_branch
      %22 = sbr.rel (0) target = $region21
    $region20: #{_encoder_forward.5} parent=1 // pred_region
      _
    $region21: #{_encoder_forward.5} parent=1 // pred_fallthru
      _
    // Predicated region
    $region22: #{_encoder_forward.5} parent=1 // pred_check
      _
    $region23: #{_encoder_forward.5} parent=1 // pred_check_branch
      %24 = sbr.rel (0) target = $region25
    $region24: #{_encoder_forward.5} parent=1 // pred_region
      _
    $region25: #{_encoder_forward.5} parent=1 // pred_fallthru
      _
    // Predicated region
    $region26: #{_encoder_forward.5} parent=1 // pred_check
      _
    $region27: #{_encoder_forward.5} parent=1 // pred_check_branch
      %26 = sbr.rel (0) target = $region29
    $region28: #{_encoder_forward.5} parent=1 // pred_region
      _
    $region29: #{_encoder_forward.5} parent=1 // pred_fallthru
      _
    %v28 = vld [vmem:[%s0] sm:$0x1]
    %v29 = vpack.c.bf16 %v28, %v28
    %v30 = vld [vmem:[%s1] sm:$0xf]
    %v31 = vld [vmem:[%s1 + $0x4] sm:$0xf]
    %v32 = vld [vmem:[%s1 + $0x8] sm:$0xf]
    %v33 = vld [vmem:[%s1 + $0xc] sm:$0xf]
    %v34 = vld [vmem:[%s1 + $0x10] sm:$0xf]
    %v35 = vld [vmem:[%s1 + $0x14] sm:$0xf]
    %v36 = vld [vmem:[%s1 + $0x18] sm:$0xf]
    %v37 = vld [vmem:[%s1 + $0x1c] sm:$0xf]
    %v38 = vld [vmem:[%s1 + $0x20] sm:$0xf]
    %v39 = vld [vmem:[%s2] sm:$0x1]
    %v49 = vunpack.c.l.b16 %v30
    %v50 = vunpack.c.l.b16 %v31
    %v51 = vunpack.c.l.b16 %v32
    %v52 = vunpack.c.l.b16 %v33
    %v53 = vunpack.c.l.b16 %v34
    %v54 = vunpack.c.l.b16 %v35
    %v55 = vunpack.c.l.b16 %v36
    %v56 = vunpack.c.l.b16 %v37
    %v57 = vunpack.c.l.b16 %v38
    %v58 = vpack.c.b16 %v50, %v49
    %v59 = vpack.c.b16 %v52, %v51
    %v60 = vpack.c.b16 %v54, %v53
    %v61 = vpack.c.b16 %v56, %v55
    %v62 = vpack.c.b16 %v57, %v57
    %vm67 = vcmask 588800
    %v69 = vsel %vm67, %v29, 0
    %vm71 = vcmask 1043456
    %v73 = vsel %vm71, %v62, 0
    %75 = vmatprep.subr.bf16.mxu0 0
    %76 = vmatpush1.bf16.msra.mxu0 %v58
    %77 = vmatprep.subr.bf16.mxu0 0
    %78 = vmatpush1.bf16.msra.mxu0 %v59
    %79 = vmatprep.subr.bf16.mxu0 0
    %80 = vmatpush1.bf16.msra.mxu0 %v60
    %81 = vmatprep.subr.bf16.mxu0 0
    %82 = vmatpush1.bf16.msra.mxu0 %v61
    %83 = vmatprep.subr.bf16.mxu0 0
    %84 = vmatpush1.bf16.msra.mxu0 %v73
    %85 = vmatprep.subr.bf16.mxu0 0
    %86 = vmatpush1.bf16.msra.mxu0 0
    %87 = vmatprep.subr.bf16.mxu0 0
    %88 = vmatpush1.bf16.msra.mxu0 0
    %89 = vmatprep.subr.bf16.mxu0 0
    %90 = vmatpush1.bf16.msra.mxu0 0
    %91 = vmatprep.subr.bf16.mxu0 0
    %92 = vmatpush1.bf16.msra.mxu0 0
    %93 = vmatprep.subr.bf16.mxu0 0
    %94 = vmatpush1.bf16.msra.mxu0 0
    %95 = vmatprep.subr.bf16.mxu0 0
    %96 = vmatpush1.bf16.msra.mxu0 0
    %97 = vmatprep.subr.bf16.mxu0 0
    %98 = vmatpush1.bf16.msra.mxu0 0
    %99 = vmatprep.subr.bf16.mxu0 0
    %100 = vmatpush1.bf16.msra.mxu0 0
    %101 = vmatprep.subr.bf16.mxu0 0
    %102 = vmatpush1.bf16.msra.mxu0 0
    %103 = vmatprep.subr.bf16.mxu0 0
    %104 = vmatpush1.bf16.msra.mxu0 0
    %105 = vmatprep.subr.bf16.mxu0 0
    %106 = vmatpush1.bf16.msra.mxu0 0
    %107 = vmatprep.mubr.bf16.mxu0 0
    %108 = vmatmul.mubr.bf16.gmra.mrb[0].mxu0 %v69
    %v109 = vpop.f32.mrb[0].mxu0
    %v110 = vadd.f32 %v39, %v109
    %v111 = vpop.f32.mrb[0].mxu0
    %v112 = vpop.f32.mrb[0].mxu0
    %v113 = vpop.f32.mrb[0].mxu0
    %114 = vdwg.mxu0
    %v115 = vmax.f32 %v110, 0.0
    %v116 = vpack.c.bf16 %v115, %v115
    %v117 = vld [vmem:[%s3] sm:$0xf]
    %v118 = vld [vmem:[%s3 + $0x4] sm:$0xf]
    %v119 = vld [vmem:[%s3 + $0x8] sm:$0xf]
    %v120 = vld [vmem:[%s3 + $0xc] sm:$0xf]
    %v121 = vld [vmem:[%s3 + $0x10] sm:$0xf]
    %v122 = vld [vmem:[%s3 + $0x14] sm:$0xf]
    %v123 = vld [vmem:[%s3 + $0x18] sm:$0xf]
    %v124 = vld [vmem:[%s3 + $0x1c] sm:$0xf]
    %v125 = vld [vmem:[%s3 + $0x20] sm:$0xf]
    %v126 = vld [vmem:[%s3 + $0x24] sm:$0xf]
    %v127 = vld [vmem:[%s3 + $0x28] sm:$0xf]
    %v128 = vld [vmem:[%s3 + $0x2c] sm:$0xf]
    %v129 = vld [vmem:[%s3 + $0x30] sm:$0xf]
    %v130 = vld [vmem:[%s3 + $0x34] sm:$0xf]
    %v131 = vld [vmem:[%s3 + $0x38] sm:$0xf]
    %v132 = vld [vmem:[%s3 + $0x3c] sm:$0xf]
    %v133 = vld [vmem:[%s4] sm:$0x1]
    %v150 = vunpack.c.l.b16 %v117
    %v151 = vunpack.c.l.b16 %v118
    %v152 = vunpack.c.l.b16 %v119
    %v153 = vunpack.c.l.b16 %v120
    %v154 = vunpack.c.l.b16 %v121
    %v155 = vunpack.c.l.b16 %v122
    %v156 = vunpack.c.l.b16 %v123
    %v157 = vunpack.c.l.b16 %v124
    %v158 = vunpack.c.l.b16 %v125
    %v159 = vunpack.c.l.b16 %v126
    %v160 = vunpack.c.l.b16 %v127
    %v161 = vunpack.c.l.b16 %v128
    %v162 = vunpack.c.l.b16 %v129
    %v163 = vunpack.c.l.b16 %v130
    %v164 = vunpack.c.l.b16 %v131
    %v165 = vunpack.c.l.b16 %v132
    %v166 = vpack.c.b16 %v151, %v150
    %v167 = vpack.c.b16 %v153, %v152
    %v168 = vpack.c.b16 %v155, %v154
    %v169 = vpack.c.b16 %v157, %v156
    %v170 = vpack.c.b16 %v159, %v158
    %v171 = vpack.c.b16 %v161, %v160
    %v172 = vpack.c.b16 %v163, %v162
    %v173 = vpack.c.b16 %v165, %v164
    %182 = vmatprep.subr.bf16.mxu0 0
    %183 = vmatpush1.bf16.msra.mxu0 %v166
    %184 = vmatprep.subr.bf16.mxu0 0
    %185 = vmatpush1.bf16.msra.mxu0 %v167
    %186 = vmatprep.subr.bf16.mxu0 0
    %187 = vmatpush1.bf16.msra.mxu0 %v168
    %188 = vmatprep.subr.bf16.mxu0 0
    %189 = vmatpush1.bf16.msra.mxu0 %v169
    %190 = vmatprep.subr.bf16.mxu0 0
    %191 = vmatpush1.bf16.msra.mxu0 %v170
    %192 = vmatprep.subr.bf16.mxu0 0
    %193 = vmatpush1.bf16.msra.mxu0 %v171
    %194 = vmatprep.subr.bf16.mxu0 0
    %195 = vmatpush1.bf16.msra.mxu0 %v172
    %196 = vmatprep.subr.bf16.mxu0 0
    %197 = vmatpush1.bf16.msra.mxu0 %v173
    %198 = vmatprep.subr.bf16.mxu0 0
    %199 = vmatpush1.bf16.msra.mxu0 0
    %200 = vmatprep.subr.bf16.mxu0 0
    %201 = vmatpush1.bf16.msra.mxu0 0
    %202 = vmatprep.subr.bf16.mxu0 0
    %203 = vmatpush1.bf16.msra.mxu0 0
    %204 = vmatprep.subr.bf16.mxu0 0
    %205 = vmatpush1.bf16.msra.mxu0 0
    %206 = vmatprep.subr.bf16.mxu0 0
    %207 = vmatpush1.bf16.msra.mxu0 0
    %208 = vmatprep.subr.bf16.mxu0 0
    %209 = vmatpush1.bf16.msra.mxu0 0
    %210 = vmatprep.subr.bf16.mxu0 0
    %211 = vmatpush1.bf16.msra.mxu0 0
    %212 = vmatprep.subr.bf16.mxu0 0
    %213 = vmatpush1.bf16.msra.mxu0 0
    %214 = vmatprep.mubr.bf16.mxu0 0
    %215 = vmatmul.mubr.bf16.gmra.mrb[0].mxu0 %v116
    %v216 = vpop.f32.mrb[0].mxu0
    %v217 = vadd.f32 %v133, %v216
    %v218 = vpop.f32.mrb[0].mxu0
    %v219 = vpop.f32.mrb[0].mxu0
    %v220 = vpop.f32.mrb[0].mxu0
    %221 = vdwg.mxu0
    %vm222 = vcmask 1040384
    %v223 = vsel %vm222, %v217, 0.0
    %224 = vadd.xlane.f32.xlu0 %v223
    %v225 = vpop.xlane.xlu0 %224
    %v226 = vrot.slane %v225, 4
    %v227 = vadd.f32 %v225, %v226
    %v228 = vrot.slane %v227, 2
    %v229 = vadd.f32 %v227, %v228
    %v230 = vrot.slane %v229, 1
    %v231 = vadd.f32 %v229, %v230
    %s232 = vtos %v231
    %v233 = vstv %s232
    %v234 = vrcp.pop 128.0
    %v235 = vmul.f32 %v233, %v234
    %v236 = vsub.f32 %v217, %v235
    %v237 = vmul.f32 %v236, %v236
    %v238 = vsel %vm222, %v237, 0.0
    %239 = vadd.xlane.f32.xlu0 %v238
    %v240 = vpop.xlane.xlu0 %239
    %v241 = vrot.slane %v240, 4
    %v242 = vadd.f32 %v240, %v241
    %v243 = vrot.slane %v242, 2
    %v244 = vadd.f32 %v242, %v243
    %v245 = vrot.slane %v244, 1
    %v246 = vadd.f32 %v244, %v245
    %s247 = vtos %v246
    %v248 = vstv %s247
    %v249 = vmul.f32 %v248, %v234
    %v250 = vrsqrt.pop %v249
    %v251 = vmul.f32 %v249, %v250
    %vm252 = vcmp.eq.f32.partialorder %v249, inf
    %v253 = vsel %vm252, %v249, %v251
    %vm254 = vcmp.eq.f32.partialorder %v249, 0.0
    %v255 = vand.u32 %v249, 2147483648
    %v256 = vsel %vm254, %v255, %v253
    %v257 = vadd.f32 %v256, 1e-05
    %v258 = vrcp.pop %v257
    %v259 = vld [vmem:[%s5] sm:$0x1]
    %v260 = vmul.f32 %v259, %v258
    %v261 = vmul.f32 %v236, %v260
    %v262 = vld [vmem:[%s6] sm:$0x1]
    %v263 = vadd.f32 %v261, %v262
    %264 = vst [vmem:[#allocation2] sm:$0x1] %v263
    // Predicated region
    $region30: #{_encoder_forward.5} parent=1 // pred_check
      _
    $region31: #{_encoder_forward.5} parent=1 // pred_check_branch
      %266 = sbr.rel (0) target = $region33
    $region32: #{_encoder_forward.5} parent=1 // pred_region
      %s268 = ssub.s32 16, 16
      %269 = vsyncadd [#allocation3], %s268
      %s271 = sshll.u32 [#allocation2], 4
      %s272 = int_to_ptr.vmem [resolvable:$true] %s271
      %274 = dma.vmem_to_hbm [thread:$0]  %s272, 16, %s7, [#allocation3]
    $region33: #{_encoder_forward.5} parent=1 // pred_fallthru
      _
    // Predicated region
    $region34: #{_encoder_forward.5} parent=1 // pred_check
      _
    $region35: #{_encoder_forward.5} parent=1 // pred_check_branch
      %276 = sbr.rel (0) target = $region37
    $region36: #{_encoder_forward.5} parent=1 // pred_region
      %277 = dma.done [#allocation3], 16
    $region37: #{_encoder_forward.5} parent=1 // pred_fallthru
      _
    %278 = vsyncpa [#allocation3], 1

</llo_original>
